<compile_context>
chip_gen: v7x
topology: tpu7x:2x2x1
jax: 0.10.0
libtpu: 0.0.40
codegen_flags: <defaults>
</compile_context>

<pallas_src>
import functools

import jax
import jax.numpy as jnp
from jax import lax
from jax.experimental import pallas as pl
from jax.experimental.pallas import tpu as pltpu  # noqa: F401

LEAKY_SLOPE = 0.2   # nn.LeakyReLU(0.2)
BN_EPS = 1e-5       # nn.BatchNorm1d default eps


def _round_up(x, m):
    return ((x + m - 1) // m) * m


def _leaky_relu(x):
    # Valid for 0 < slope < 1: max(x, slope*x) == leaky_relu(x).
    return jnp.maximum(x, LEAKY_SLOPE * x)


def fused_kernel(x_ref, w1_ref, w2_ref, prm_ref, o_ref, *, pn, npath, cov):
    # x_ref  : (B, pn + cov)  full input; sliced statically in-kernel
    # w1_ref : (pn, Kh)       block-diagonal first-layer weights (pre-T, padded)
    # w2_ref : (Kh, P)        block-packed second-layer weights (padded rows)
    # prm_ref: (5, L)         row0 bn_scale, row1 bn_shift, row2 fc_w_path,
    #                         row3 fc_w_cov, row4 fc_bias (lane 0)
    # o_ref  : (B, 1)
    xp = x_ref[:, :pn]                      # (B, P*Nv), lane-aligned slice
    scale = prm_ref[0:1, :npath]
    shift = prm_ref[1:2, :npath]
    wp = prm_ref[2:3, :npath]
    b = prm_ref[4:5, 0:1]                   # (1, 1) scalar bias

    h = jnp.dot(xp, w1_ref[...], preferred_element_type=jnp.float32)
    h = _leaky_relu(h)                      # act_fn; dropout identity (eval)
    p = jnp.dot(h, w2_ref[...], preferred_element_type=jnp.float32)
    p = _leaky_relu(p)                      # (B, P) pathway layer, lane-dense

    z = p * scale + shift                   # BatchNorm1d (eval), pre-folded
    # pathway_layer / torch.norm(pathway_layer, 2): GLOBAL Frobenius norm over
    # the whole (B, P) batch.  Apply the rsqrt to the already-reduced (B,1)
    # dot product instead of the full tensor (single EUP rsqrt + scalar mul).
    # (NaN if the norm is 0 — same hazard as the PyTorch reference.)
    inv_nrm = lax.rsqrt(jnp.sum(z * z))

    logits = jnp.sum(z * wp, axis=-1, keepdims=True) * inv_nrm
    if cov > 0:
        xc = x_ref[:, pn:pn + cov]          # (B, C) covariates
        wc = prm_ref[3:4, :cov]
        logits = logits + jnp.sum(xc * wc, axis=-1, keepdims=True)
    o_ref[...] = jax.nn.sigmoid(logits + b)


def deephiscom_forward(x, packed, *, npath, nvar_per, covariate):
    B = x.shape[0]
    pn = npath * nvar_per
    kernel = functools.partial(fused_kernel, pn=pn, npath=npath, cov=covariate)
    return pl.pallas_call(
        kernel,
        out_shape=jax.ShapeDtypeStruct((B, 1), jnp.float32),
    )(x, packed["w1_bd"], packed["w2_bd"], packed["prm"])


def make_params(npath, nvar_per, hidden, covariate, key=None):
    """Parameters in the PyTorch module's native layout."""
    if key is None:
        # Module __init__ values: pathway Linear weights filled 0.01 (no bias),
        # fc_path_disease weight 0 / bias 0.001, BatchNorm1d defaults.
        w1 = jnp.full((npath, hidden, nvar_per), 0.01, dtype=jnp.float32)
        w2 = jnp.full((npath, 1, hidden), 0.01, dtype=jnp.float32)
        fc_w = jnp.zeros((1, npath + covariate), dtype=jnp.float32)
        fc_b = jnp.full((1, 1), 0.001, dtype=jnp.float32)
    else:
        k1, k2, k3, k4 = jax.random.split(key, 4)
        w1 = 0.1 * jax.random.normal(k1, (npath, hidden, nvar_per), jnp.float32)
        w2 = 0.1 * jax.random.normal(k2, (npath, 1, hidden), jnp.float32)
        fc_w = 0.1 * jax.random.normal(k3, (1, npath + covariate), jnp.float32)
        fc_b = 0.1 * jax.random.normal(k4, (1, 1), jnp.float32)
    bn_gamma = jnp.ones((1, npath), jnp.float32)
    bn_beta = jnp.zeros((1, npath), jnp.float32)
    bn_mean = jnp.zeros((1, npath), jnp.float32)
    bn_var = jnp.ones((1, npath), jnp.float32)
    return dict(w1=w1, w2=w2, bn_gamma=bn_gamma, bn_beta=bn_beta,
                bn_mean=bn_mean, bn_var=bn_var, fc_w=fc_w, fc_b=fc_b)


def pack_params(params, *, npath, covariate):
    """One-time host-side repack: block-diagonal weights (hidden dim padded to
    a lane-tile multiple), folded eval-BN, and a single small param buffer."""
    w1 = params["w1"]                      # (P, H, Nv)  PyTorch (out, in)
    w2 = params["w2"]                      # (P, 1, H)
    P, H, Nv = w1.shape
    assert P == npath
    eye = jnp.eye(P, dtype=w1.dtype)
    w1_t = jnp.transpose(w1, (0, 2, 1))    # (P, Nv, H): pre-transposed
    w1_bd = jnp.einsum("pq,pnh->pnqh", eye, w1_t).reshape(P * Nv, P * H)
    w2_bd = jnp.einsum("pq,ph->phq", eye, w2[:, 0, :]).reshape(P * H, P)

    # Pad the hidden contraction dim (P*H) up to a multiple of 128 so the
    # intermediate activation is lane-dense and the second MXU pass is
    # full-width.  Exact: padded h columns are leaky_relu(0)=0 and the
    # matching w2_bd rows are zero.
    kh = P * H
    kh_pad = _round_up(kh, 128)
    if kh_pad != kh:
        w1_bd = jnp.pad(w1_bd, ((0, 0), (0, kh_pad - kh)))
        w2_bd = jnp.pad(w2_bd, ((0, kh_pad - kh), (0, 0)))

    scale = params["bn_gamma"] * lax.rsqrt(params["bn_var"] + BN_EPS)
    shift = params["bn_beta"] - params["bn_mean"] * scale

    # Single packed small-parameter buffer (one DMA instead of five).
    L = max(npath, max(covariate, 1))
    prm = jnp.zeros((5, L), jnp.float32)
    prm = prm.at[0, :npath].set(scale[0])
    prm = prm.at[1, :npath].set(shift[0])
    prm = prm.at[2, :npath].set(params["fc_w"][0, :npath])
    if covariate > 0:
        prm = prm.at[3, :covariate].set(params["fc_w"][0, npath:])
    prm = prm.at[4, 0].set(params["fc_b"][0, 0])
    return dict(w1_bd=w1_bd, w2_bd=w2_bd, prm=prm)


def reference_forward(x, params, *, npath, nvar_per):
    """Pure-JAX reference mirroring the PyTorch forward (eval mode)."""
    outs = []
    for p in range(npath):
        xp = x[:, p * nvar_per:(p + 1) * nvar_per]
        h = jnp.where(xp @ params["w1"][p].T > 0,
                      xp @ params["w1"][p].T, LEAKY_SLOPE * (xp @ params["w1"][p].T))
        o = h @ params["w2"][p].T
        outs.append(jnp.where(o > 0, o, LEAKY_SLOPE * o))
    pw = jnp.concatenate(outs, axis=1)
    z = (pw - params["bn_mean"]) * lax.rsqrt(params["bn_var"] + BN_EPS)
    z = z * params["bn_gamma"] + params["bn_beta"]
    z = z / jnp.sqrt(jnp.sum(z * z))
    xc = x[:, npath * nvar_per:]
    logits = jnp.concatenate([z, xc], axis=1) @ params["fc_w"].T + params["fc_b"]
    return jax.nn.sigmoid(logits)


if __name__ == "__main__":
    # Small shapes consistent with the module structure:
    # nvar = [16]*8, width = [8]*8, layer = [1]*8, covariate = 4.
    # B=8 matches the f32 sublane tile; P*Nv = 128 keeps the in-kernel
    # covariate slice lane-aligned.  (For real throughput, stack permutation
    # replicates so the matmul M dim reaches >=128/256 — see perf notes.)
    NPATH, NVAR, HIDDEN, COV, BATCH = 8, 16, 8, 4, 8

    key = jax.random.PRNGKey(0)
    kx, kp = jax.random.split(key)
    x = jax.random.normal(kx, (BATCH, NPATH * NVAR + COV), dtype=jnp.float32)

    # 1) The module's own initial parameter values (init_weights / fc fill).
    params0 = make_params(NPATH, NVAR, HIDDEN, COV)
    out0 = deephiscom_forward(
        x, pack_params(params0, npath=NPATH, covariate=COV),
        npath=NPATH, nvar_per=NVAR, covariate=COV)
    out0 = jax.block_until_ready(out0)
    assert out0.shape == (BATCH, 1)

    # 2) Random parameters: check the fused kernel against the JAX reference.
    params1 = make_params(NPATH, NVAR, HIDDEN, COV, key=kp)
    out1 = deephiscom_forward(
        x, pack_params(params1, npath=NPATH, covariate=COV),
        npath=NPATH, nvar_per=NVAR, covariate=COV)
    out1 = jax.block_until_ready(out1)

    ref0 = reference_forward(x, params0, npath=NPATH, nvar_per=NVAR)
    ref1 = reference_forward(x, params1, npath=NPATH, nvar_per=NVAR)
    assert jnp.allclose(out0, ref0, atol=1e-5, rtol=1e-5)
    assert jnp.allclose(out1, ref1, atol=1e-5, rtol=1e-5)

    print("KERNEL_OK")
</pallas_src>

<mosaic_0001>
module attributes {stable_mosaic.version = 11 : i64} {
  func.func @fused_kernel(%arg0: memref<8x132xf32, #tpu.memory_space<vmem>>, %arg1: memref<128x128xf32, #tpu.memory_space<vmem>>, %arg2: memref<128x8xf32, #tpu.memory_space<vmem>>, %arg3: memref<5x8xf32, #tpu.memory_space<vmem>>, %arg4: memref<8x1xf32, #tpu.memory_space<vmem>>) attributes {dimension_semantics = [], scalar_prefetch = 0 : i64, scratch_operands = 0 : i64, tpu.core_type = #tpu.core_type<tc>} {
    %c0 = arith.constant 0 : index
    %c0_0 = arith.constant 0 : index
    %0 = vector.load %arg0[%c0, %c0_0] : memref<8x132xf32, #tpu.memory_space<vmem>>, vector<8x128xf32>
    %c0_1 = arith.constant 0 : index
    %c0_2 = arith.constant 0 : index
    %1 = vector.load %arg3[%c0_1, %c0_2] : memref<5x8xf32, #tpu.memory_space<vmem>>, vector<1x8xf32>
    %c1 = arith.constant 1 : index
    %c0_3 = arith.constant 0 : index
    %2 = vector.load %arg3[%c1, %c0_3] : memref<5x8xf32, #tpu.memory_space<vmem>>, vector<1x8xf32>
    %c2 = arith.constant 2 : index
    %c0_4 = arith.constant 0 : index
    %3 = vector.load %arg3[%c2, %c0_4] : memref<5x8xf32, #tpu.memory_space<vmem>>, vector<1x8xf32>
    %c4 = arith.constant 4 : index
    %c0_5 = arith.constant 0 : index
    %4 = vector.load %arg3[%c4, %c0_5] : memref<5x8xf32, #tpu.memory_space<vmem>>, vector<1x1xf32>
    %c0_6 = arith.constant 0 : index
    %c0_7 = arith.constant 0 : index
    %5 = vector.load %arg1[%c0_6, %c0_7] : memref<128x128xf32, #tpu.memory_space<vmem>>, vector<128x128xf32>
    %cst = arith.constant dense<0.000000e+00> : vector<8x128xf32>
    %6 = tpu.matmul %0, %5, %cst {dimension_numbers = #tpu.dot_dimension_numbers<[1], [0], [0], [1], [0, 0, 1, 1], [], []>} : vector<8x128xf32>, vector<128x128xf32>, vector<8x128xf32> -> vector<8x128xf32>
    %cst_8 = arith.constant 2.000000e-01 : f32
    %7 = vector.broadcast %cst_8 : f32 to vector<8x128xf32>
    %8 = arith.mulf %7, %6 : vector<8x128xf32>
    %9 = arith.maximumf %6, %8 : vector<8x128xf32>
    %c0_9 = arith.constant 0 : index
    %c0_10 = arith.constant 0 : index
    %10 = vector.load %arg2[%c0_9, %c0_10] : memref<128x8xf32, #tpu.memory_space<vmem>>, vector<128x8xf32>
    %cst_11 = arith.constant dense<0.000000e+00> : vector<8x8xf32>
    %11 = tpu.matmul %9, %10, %cst_11 {dimension_numbers = #tpu.dot_dimension_numbers<[1], [0], [0], [1], [0, 0, 1, 1], [], []>} : vector<8x128xf32>, vector<128x8xf32>, vector<8x8xf32> -> vector<8x8xf32>
    %cst_12 = arith.constant 2.000000e-01 : f32
    %12 = vector.broadcast %cst_12 : f32 to vector<8x8xf32>
    %13 = arith.mulf %12, %11 : vector<8x8xf32>
    %14 = arith.maximumf %11, %13 : vector<8x8xf32>
    %15 = vector.broadcast %1 : vector<1x8xf32> to vector<8x8xf32>
    %16 = arith.mulf %14, %15 : vector<8x8xf32>
    %17 = vector.broadcast %2 : vector<1x8xf32> to vector<8x8xf32>
    %18 = arith.addf %16, %17 : vector<8x8xf32>
    %19 = arith.mulf %18, %18 : vector<8x8xf32>
    %20 = vector.shape_cast %19 : vector<8x8xf32> to vector<1x8x8xf32>
    %cst_13 = arith.constant dense<0.000000e+00> : vector<1xf32>
    %21 = vector.multi_reduction <add>, %20, %cst_13 [1, 2] : vector<1x8x8xf32> to vector<1xf32>
    %22 = vector.shape_cast %21 : vector<1xf32> to vector<1x1x1xf32>
    %23 = vector.extract %22[0, 0, 0] : f32 from vector<1x1x1xf32>
    %24 = math.rsqrt %23 : f32
    %25 = vector.broadcast %3 : vector<1x8xf32> to vector<8x8xf32>
    %26 = arith.mulf %18, %25 : vector<8x8xf32>
    %cst_14 = arith.constant dense<0.000000e+00> : vector<8xf32>
    %27 = vector.multi_reduction <add>, %26, %cst_14 [1] : vector<8x8xf32> to vector<8xf32>
    %28 = vector.shape_cast %27 : vector<8xf32> to vector<8x1xf32>
    %29 = vector.broadcast %24 : f32 to vector<8x1xf32>
    %30 = arith.mulf %28, %29 : vector<8x1xf32>
    %c0_15 = arith.constant 0 : index
    %c128 = arith.constant 128 : index
    %31 = vector.load %arg0[%c0_15, %c128] : memref<8x132xf32, #tpu.memory_space<vmem>>, vector<8x4xf32>
    %c3 = arith.constant 3 : index
    %c0_16 = arith.constant 0 : index
    %32 = vector.load %arg3[%c3, %c0_16] : memref<5x8xf32, #tpu.memory_space<vmem>>, vector<1x4xf32>
    %33 = vector.broadcast %32 : vector<1x4xf32> to vector<8x4xf32>
    %34 = arith.mulf %31, %33 : vector<8x4xf32>
    %cst_17 = arith.constant dense<0.000000e+00> : vector<8xf32>
    %35 = vector.multi_reduction <add>, %34, %cst_17 [1] : vector<8x4xf32> to vector<8xf32>
    %36 = vector.shape_cast %35 : vector<8xf32> to vector<8x1xf32>
    %37 = arith.addf %30, %36 : vector<8x1xf32>
    %38 = vector.broadcast %4 : vector<1x1xf32> to vector<8x1xf32>
    %39 = arith.addf %37, %38 : vector<8x1xf32>
    %40 = arith.negf %39 : vector<8x1xf32>
    %41 = math.exp %40 : vector<8x1xf32>
    %cst_18 = arith.constant 1.000000e+00 : f32
    %42 = vector.broadcast %cst_18 : f32 to vector<8x1xf32>
    %43 = arith.addf %42, %41 : vector<8x1xf32>
    %44 = arith.divf %42, %43 : vector<8x1xf32>
    %c0_19 = arith.constant 0 : index
    %c0_20 = arith.constant 0 : index
    %45 = vector.load %arg4[%c0_19, %c0_20] : memref<8x1xf32, #tpu.memory_space<vmem>>, vector<8x1xf32>
    tpu.vector_store %arg4[%c0_19, %c0_20], %44 {strides = array<i32>} : memref<8x1xf32, #tpu.memory_space<vmem>>, vector<8x1xf32>,
    return
  }
}

</mosaic_0001>

<llo_original>
// kernel: tpu_custom_call.1
$region0: #{tpu_custom_call.1}
  #allocation0 [shape = 'u32[]', space=smem, size = 0x4, offset = 0x4, fixed_abs, tag = 'smem constant byte address 0x4 - core index']
  #allocation1 [shape = 'u32[144,128]{1,0:T(1,128)}', space=vmem, size = 0x12000, scoped, tag = 'internal scratch']
  %s0 = inlined_call_operand.hbm [shape: f32[8,132], index: 0, kind: input, shape index: {}]
  %s1 = inlined_call_operand.vmem [shape: f32[128,128], index: 1, kind: input, shape index: {}]
  %s2 = inlined_call_operand.vmem [shape: f32[128,8], index: 2, kind: input, shape index: {}]
  %s3 = inlined_call_operand.vmem [shape: f32[5,8], index: 3, kind: input, shape index: {}]
  %s4 = inlined_call_operand.vmem [shape: f32[8,1], index: 4, kind: output, shape index: {}]
  %s5 = sld [smem:[#allocation0]]
  $region30: #{tpu_custom_call.1} parent=0
    _
  %s7 = ssub.s32 1, %s5
  %s8 = scalar_select 0, %s7, %s5
  $region1: #{tpu_custom_call.1} parent=0
    #allocation2 [shape = 'u8[8192]{0}', space=vmem, size = 0x2000, scoped, tag = 'input window, operand 0, single buffered']
    #allocation3 [shape = 's32[1]{0}', space=sflag, size = 0x4, scoped, tag = 'scoped memory for tpu_custom_call.1']
    %9 = vsyncpa [#allocation3], 0
    // Predicated region
    $region2: #{tpu_custom_call.1} parent=1 // pred_check
      _
    $region3: #{tpu_custom_call.1} parent=1 // pred_check_branch
      %11 = sbr.rel (0) target = $region5
    $region4: #{tpu_custom_call.1} parent=1 // pred_region
      %s13 = ssub.s32 256, 256
      %14 = vsyncadd [#allocation3], %s13
      %s16 = sshll.u32 [#allocation2], 4
      %s17 = int_to_ptr.vmem [resolvable:$true] %s16
      %19 = dma.hbm_to_vmem [thread:$0]  %s0, 256, %s17, [#allocation3]
    $region5: #{tpu_custom_call.1} parent=1 // pred_fallthru
      _
    // Predicated region
    $region6: #{tpu_custom_call.1} parent=1 // pred_check
      _
    $region7: #{tpu_custom_call.1} parent=1 // pred_check_branch
      %21 = sbr.rel (0) target = $region9
    $region8: #{tpu_custom_call.1} parent=1 // pred_region
      _
    $region9: #{tpu_custom_call.1} parent=1 // pred_fallthru
      _
    // Predicated region
    $region10: #{tpu_custom_call.1} parent=1 // pred_check
      _
    $region11: #{tpu_custom_call.1} parent=1 // pred_check_branch
      %23 = sbr.rel (0) target = $region13
    $region12: #{tpu_custom_call.1} parent=1 // pred_region
      _
    $region13: #{tpu_custom_call.1} parent=1 // pred_fallthru
      _
    // Predicated region
    $region14: #{tpu_custom_call.1} parent=1 // pred_check
      _
    $region15: #{tpu_custom_call.1} parent=1 // pred_check_branch
      %25 = sbr.rel (0) target = $region17
    $region16: #{tpu_custom_call.1} parent=1 // pred_region
      _
    $region17: #{tpu_custom_call.1} parent=1 // pred_fallthru
      _
    // Predicated region
    $region18: #{tpu_custom_call.1} parent=1 // pred_check
      _
    $region19: #{tpu_custom_call.1} parent=1 // pred_check_branch
      %27 = sbr.rel (0) target = $region21
    $region20: #{tpu_custom_call.1} parent=1 // pred_region
      %28 = dma.done [#allocation3], 256
    $region21: #{tpu_custom_call.1} parent=1 // pred_fallthru
      _
    %v29 = vld [vmem:[#allocation2] sm:$0xff]
    %v30 = vld [vmem:[%s3] sm:$0x1]
    %v31 = vld [vmem:[%s3 + $0x1] sm:$0x1]
    %v32 = vld [vmem:[%s3 + $0x2] sm:$0x1]
    %v33 = vld [vmem:[%s3 + $0x4] sm:$0x1]
    %v34 = vld [vmem:[%s1] sm:$0xff]
    %v35 = vld [vmem:[%s1 + $0x8] sm:$0xff]
    %v36 = vld [vmem:[%s1 + $0x10] sm:$0xff]
    %v37 = vld [vmem:[%s1 + $0x18] sm:$0xff]
    %v38 = vld [vmem:[%s1 + $0x20] sm:$0xff]
    %v39 = vld [vmem:[%s1 + $0x28] sm:$0xff]
    %v40 = vld [vmem:[%s1 + $0x30] sm:$0xff]
    %v41 = vld [vmem:[%s1 + $0x38] sm:$0xff]
    %v42 = vld [vmem:[%s1 + $0x40] sm:$0xff]
    %v43 = vld [vmem:[%s1 + $0x48] sm:$0xff]
    %v44 = vld [vmem:[%s1 + $0x50] sm:$0xff]
    %v45 = vld [vmem:[%s1 + $0x58] sm:$0xff]
    %v46 = vld [vmem:[%s1 + $0x60] sm:$0xff]
    %v47 = vld [vmem:[%s1 + $0x68] sm:$0xff]
    %v48 = vld [vmem:[%s1 + $0x70] sm:$0xff]
    %v49 = vld [vmem:[%s1 + $0x78] sm:$0xff]
    %50 = vmatprep.subr.mxu0 0.0
    %51 = vmatpush1.msra.mxu0 %v34
    %52 = vmatprep.subr.mxu0 0.0
    %53 = vmatpush1.msra.mxu0 %v35
    %54 = vmatprep.subr.mxu0 0.0
    %55 = vmatpush1.msra.mxu0 %v36
    %56 = vmatprep.subr.mxu0 0.0
    %57 = vmatpush1.msra.mxu0 %v37
    %58 = vmatprep.subr.mxu0 0.0
    %59 = vmatpush1.msra.mxu0 %v38
    %60 = vmatprep.subr.mxu0 0.0
    %61 = vmatpush1.msra.mxu0 %v39
    %62 = vmatprep.subr.mxu0 0.0
    %63 = vmatpush1.msra.mxu0 %v40
    %64 = vmatprep.subr.mxu0 0.0
    %65 = vmatpush1.msra.mxu0 %v41
    %66 = vmatprep.subr.mxu0 0.0
    %67 = vmatpush1.msra.mxu0 %v42
    %68 = vmatprep.subr.mxu0 0.0
    %69 = vmatpush1.msra.mxu0 %v43
    %70 = vmatprep.subr.mxu0 0.0
    %71 = vmatpush1.msra.mxu0 %v44
    %72 = vmatprep.subr.mxu0 0.0
    %73 = vmatpush1.msra.mxu0 %v45
    %74 = vmatprep.subr.mxu0 0.0
    %75 = vmatpush1.msra.mxu0 %v46
    %76 = vmatprep.subr.mxu0 0.0
    %77 = vmatpush1.msra.mxu0 %v47
    %78 = vmatprep.subr.mxu0 0.0
    %79 = vmatpush1.msra.mxu0 %v48
    %80 = vmatprep.subr.mxu0 0.0
    %81 = vmatpush1.msra.mxu0 %v49
    %82 = vmatprep.subr.mxu0 0.0
    %83 = vmatpush1.msra.mxu0 0.0
    %84 = vmatprep.subr.mxu0 0.0
    %85 = vmatpush1.msra.mxu0 0.0
    %86 = vmatprep.subr.mxu0 0.0
    %87 = vmatpush1.msra.mxu0 0.0
    %88 = vmatprep.subr.mxu0 0.0
    %89 = vmatpush1.msra.mxu0 0.0
    %90 = vmatprep.subr.mxu0 0.0
    %91 = vmatpush1.msra.mxu0 0.0
    %92 = vmatprep.subr.mxu0 0.0
    %93 = vmatpush1.msra.mxu0 0.0
    %94 = vmatprep.subr.mxu0 0.0
    %95 = vmatpush1.msra.mxu0 0.0
    %96 = vmatprep.subr.mxu0 0.0
    %97 = vmatpush1.msra.mxu0 0.0
    %98 = vmatprep.subr.mxu0 0.0
    %99 = vmatpush1.msra.mxu0 0.0
    %100 = vmatprep.subr.mxu0 0.0
    %101 = vmatpush1.msra.mxu0 0.0
    %102 = vmatprep.subr.mxu0 0.0
    %103 = vmatpush1.msra.mxu0 0.0
    %104 = vmatprep.subr.mxu0 0.0
    %105 = vmatpush1.msra.mxu0 0.0
    %106 = vmatprep.subr.mxu0 0.0
    %107 = vmatpush1.msra.mxu0 0.0
    %108 = vmatprep.subr.mxu0 0.0
    %109 = vmatpush1.msra.mxu0 0.0
    %110 = vmatprep.subr.mxu0 0.0
    %111 = vmatpush1.msra.mxu0 0.0
    %112 = vmatprep.subr.mxu0 0.0
    %113 = vmatpush1.msra.mxu0 0.0
    %114 = vmatprep.mubr.f32.mxu0 0.0
    %115 = vmatmul.mubr.f32.gmra.mrb[0].mxu0 %v29
    %v116 = vpop.f32.mrb[0].mxu0
    %v117 = vadd.f32 0.0, %v116
    %v118 = vpop.f32.mrb[0].mxu0
    %119 = vdwg.mxu0
    %v120 = vmul.f32 %v117, 0.2
    %v121 = vmax.f32 %v117, %v120
    %v122 = vld [vmem:[%s2] sm:$0xff]
    %v123 = vld [vmem:[%s2 + $0x8] sm:$0xff]
    %v124 = vld [vmem:[%s2 + $0x10] sm:$0xff]
    %v125 = vld [vmem:[%s2 + $0x18] sm:$0xff]
    %v126 = vld [vmem:[%s2 + $0x20] sm:$0xff]
    %v127 = vld [vmem:[%s2 + $0x28] sm:$0xff]
    %v128 = vld [vmem:[%s2 + $0x30] sm:$0xff]
    %v129 = vld [vmem:[%s2 + $0x38] sm:$0xff]
    %v130 = vld [vmem:[%s2 + $0x40] sm:$0xff]
    %v131 = vld [vmem:[%s2 + $0x48] sm:$0xff]
    %v132 = vld [vmem:[%s2 + $0x50] sm:$0xff]
    %v133 = vld [vmem:[%s2 + $0x58] sm:$0xff]
    %v134 = vld [vmem:[%s2 + $0x60] sm:$0xff]
    %v135 = vld [vmem:[%s2 + $0x68] sm:$0xff]
    %v136 = vld [vmem:[%s2 + $0x70] sm:$0xff]
    %v137 = vld [vmem:[%s2 + $0x78] sm:$0xff]
    %138 = vmatprep.subr.mxu0 0.0
    %139 = vmatpush1.msra.mxu0 %v122
    %140 = vmatprep.subr.mxu0 0.0
    %141 = vmatpush1.msra.mxu0 %v123
    %142 = vmatprep.subr.mxu0 0.0
    %143 = vmatpush1.msra.mxu0 %v124
    %144 = vmatprep.subr.mxu0 0.0
    %145 = vmatpush1.msra.mxu0 %v125
    %146 = vmatprep.subr.mxu0 0.0
    %147 = vmatpush1.msra.mxu0 %v126
    %148 = vmatprep.subr.mxu0 0.0
    %149 = vmatpush1.msra.mxu0 %v127
    %150 = vmatprep.subr.mxu0 0.0
    %151 = vmatpush1.msra.mxu0 %v128
    %152 = vmatprep.subr.mxu0 0.0
    %153 = vmatpush1.msra.mxu0 %v129
    %154 = vmatprep.subr.mxu0 0.0
    %155 = vmatpush1.msra.mxu0 %v130
    %156 = vmatprep.subr.mxu0 0.0
    %157 = vmatpush1.msra.mxu0 %v131
    %158 = vmatprep.subr.mxu0 0.0
    %159 = vmatpush1.msra.mxu0 %v132
    %160 = vmatprep.subr.mxu0 0.0
    %161 = vmatpush1.msra.mxu0 %v133
    %162 = vmatprep.subr.mxu0 0.0
    %163 = vmatpush1.msra.mxu0 %v134
    %164 = vmatprep.subr.mxu0 0.0
    %165 = vmatpush1.msra.mxu0 %v135
    %166 = vmatprep.subr.mxu0 0.0
    %167 = vmatpush1.msra.mxu0 %v136
    %168 = vmatprep.subr.mxu0 0.0
    %169 = vmatpush1.msra.mxu0 %v137
    %170 = vmatprep.subr.mxu0 0.0
    %171 = vmatpush1.msra.mxu0 0.0
    %172 = vmatprep.subr.mxu0 0.0
    %173 = vmatpush1.msra.mxu0 0.0
    %174 = vmatprep.subr.mxu0 0.0
    %175 = vmatpush1.msra.mxu0 0.0
    %176 = vmatprep.subr.mxu0 0.0
    %177 = vmatpush1.msra.mxu0 0.0
    %178 = vmatprep.subr.mxu0 0.0
    %179 = vmatpush1.msra.mxu0 0.0
    %180 = vmatprep.subr.mxu0 0.0
    %181 = vmatpush1.msra.mxu0 0.0
    %182 = vmatprep.subr.mxu0 0.0
    %183 = vmatpush1.msra.mxu0 0.0
    %184 = vmatprep.subr.mxu0 0.0
    %185 = vmatpush1.msra.mxu0 0.0
    %186 = vmatprep.subr.mxu0 0.0
    %187 = vmatpush1.msra.mxu0 0.0
    %188 = vmatprep.subr.mxu0 0.0
    %189 = vmatpush1.msra.mxu0 0.0
    %190 = vmatprep.subr.mxu0 0.0
    %191 = vmatpush1.msra.mxu0 0.0
    %192 = vmatprep.subr.mxu0 0.0
    %193 = vmatpush1.msra.mxu0 0.0
    %194 = vmatprep.subr.mxu0 0.0
    %195 = vmatpush1.msra.mxu0 0.0
    %196 = vmatprep.subr.mxu0 0.0
    %197 = vmatpush1.msra.mxu0 0.0
    %198 = vmatprep.subr.mxu0 0.0
    %199 = vmatpush1.msra.mxu0 0.0
    %200 = vmatprep.subr.mxu0 0.0
    %201 = vmatpush1.msra.mxu0 0.0
    %202 = vmatprep.mubr.f32.mxu0 0.0
    %203 = vmatmul.mubr.f32.gmra.mrb[0].mxu0 %v121
    %v204 = vpop.f32.mrb[0].mxu0
    %v205 = vadd.f32 0.0, %v204
    %v206 = vpop.f32.mrb[0].mxu0
    %207 = vdwg.mxu0
    %v208 = vmul.f32 %v205, 0.2
    %v209 = vmax.f32 %v205, %v208
    %v210 = vlaneseq
    %v211 = vshrl.u32 %v210, 7
    %v212 = vsub.s32 0, %v211
    %v213 = vrot.slane %v30, %v212
    %v214 = vmul.f32 %v209, %v213
    %v215 = vlaneseq
    %v216 = vshrl.u32 %v215, 7
    %v217 = vsub.s32 0, %v216
    %v218 = vrot.slane %v31, %v217
    %v219 = vadd.f32 %v214, %v218
    %v220 = vmul.f32 %v219, %v219
    %vm221 = vcmask 64512
    %v222 = vsel %vm221, %v220, 0.0
    %223 = vadd.xlane.f32.xlu0 %v222
    %v224 = vpop.xlane.xlu0 %223
    %v225 = vrot.slane %v224, 4
    %v226 = vadd.f32 %v224, %v225
    %v227 = vrot.slane %v226, 2
    %v228 = vadd.f32 %v226, %v227
    %v229 = vrot.slane %v228, 1
    %v230 = vadd.f32 %v228, %v229
    %s231 = vtos %v230
    %v232 = vstv %s231
    %v233 = vrsqrt.pop %v232
    %s234 = vtos %v233
    %v235 = vlaneseq
    %v236 = vshrl.u32 %v235, 7
    %v237 = vsub.s32 0, %v236
    %v238 = vrot.slane %v32, %v237
    %v239 = vmul.f32 %v219, %v238
    %v240 = vsel %vm221, %v239, 0.0
    %241 = vadd.xlane.f32.xlu0 %v240
    %v242 = vpop.xlane.xlu0 %241
    %v243 = vstv %s234
    %v244 = vmul.f32 %v242, %v243
    %v245 = vld [vmem:[#allocation2 + $0x8] sm:$0xff]
    %v246 = vld [vmem:[%s3 + $0x3] sm:$0x1]
    %v247 = vlaneseq
    %v248 = vshrl.u32 %v247, 7
    %v249 = vsub.s32 0, %v248
    %v250 = vrot.slane %v246, %v249
    %v251 = vmul.f32 %v245, %v250
    %vm252 = vcmask 31744
    %v253 = vsel %vm252, %v251, 0.0
    %254 = vadd.xlane.f32.xlu0 %v253
    %v255 = vpop.xlane.xlu0 %254
    %v256 = vadd.f32 %v244, %v255
    %v257 = vlaneseq
    %v258 = vshrl.u32 %v257, 7
    %v259 = vsub.s32 0, %v258
    %v260 = vrot.slane %v33, %v259
    %v261 = vadd.f32 %v256, %v260
    %v262 = vxor.u32 %v261, 2147483648
    %v263 = vmul.f32 %v262, 1.442695
    %v264 = vpow.pop %v263
    %v265 = vadd.f32 %v264, 1.0
    %v266 = vrcp.pop %v265
    %v267 = vmul.f32 1.0, %v266
    %vm268 = vcmask 7168
    %269 = vst.msk [vmem:[%s4] sm:$0xff] %vm268, %v267
    // Predicated region
    $region22: #{tpu_custom_call.1} parent=1 // pred_check
      _
    $region23: #{tpu_custom_call.1} parent=1 // pred_check_branch
      %271 = sbr.rel (0) target = $region25
    $region24: #{tpu_custom_call.1} parent=1 // pred_region
      _
    $region25: #{tpu_custom_call.1} parent=1 // pred_fallthru
      _
    // Predicated region
    $region26: #{tpu_custom_call.1} parent=1 // pred_check
      _
    $region27: #{tpu_custom_call.1} parent=1 // pred_check_branch
      %273 = sbr.rel (0) target = $region29
    $region28: #{tpu_custom_call.1} parent=1 // pred_region
      _
    $region29: #{tpu_custom_call.1} parent=1 // pred_fallthru
      _
    %274 = vsyncpa [#allocation3], 1

</llo_original>
